<compile_context>
chip_gen: v7x
topology: tpu7x:2x2x1
jax: 0.10.0
libtpu: 0.0.40
codegen_flags: <defaults>
</compile_context>

<pallas_src>
import jax
import jax.numpy as jnp
from jax.experimental import pallas as pl
from jax.experimental.pallas import tpu as pltpu


def _round_up(a, m):
    return ((a + m - 1) // m) * m


def _vmem_plan():
    """Per-generation VMEM plan: (A_hat slab budget per buffer, TM cap, vmem limit)."""
    cap = 64 * 1024 * 1024
    try:
        info = pltpu.get_tpu_info()
        cap = int(getattr(info, "vmem_capacity_bytes", cap))
    except Exception:
        pass
    if cap >= 128 * 1024 * 1024:      # v5e / v6e: 128 MiB VMEM
        return {
            "slab_bytes": 16 * 1024 * 1024,
            "tm_cap": 2048,
            "vmem_limit": 100 * 1024 * 1024,
        }
    # v7x (64 MiB VMEM/TC) or unknown: stay conservative.
    return {
        "slab_bytes": 4 * 1024 * 1024,
        "tm_cap": 512,
        "vmem_limit": 48 * 1024 * 1024,
    }


def _pick_row_tile(n_pad, slab_bytes, tm_cap):
    """Row tile TM for the bf16 A_hat slab: multiple of 256 (>=128), bounded by
    the per-buffer VMEM budget and the generation-specific cap."""
    budget_rows = max(128, slab_bytes // max(2 * n_pad, 1))
    tm = min(tm_cap, n_pad, budget_rows)
    if tm >= 256:
        tm = (tm // 256) * 256
    else:
        tm = 128
    return min(tm, n_pad)


# ---------------------------------------------------------------------------
# Kernel 1: projection prologue  XW = X @ W_all  (f32 accumulate -> bf16 out)
# ---------------------------------------------------------------------------
def _project_kernel(x_ref, w_ref, xw_ref):
    xw_ref[...] = jnp.dot(
        x_ref[...], w_ref[...], preferred_element_type=jnp.float32
    ).astype(jnp.bfloat16)


def _project(x_pad, w_all, tm, vmem_limit):
    n_pad, f_in = x_pad.shape
    f_total = w_all.shape[1]
    return pl.pallas_call(
        _project_kernel,
        out_shape=jax.ShapeDtypeStruct((n_pad, f_total), jnp.bfloat16),
        grid_spec=pltpu.PrefetchScalarGridSpec(
            num_scalar_prefetch=0,
            grid=(n_pad // tm,),
            in_specs=[
                pl.BlockSpec((tm, f_in), lambda i: (i, 0)),        # X row tile
                pl.BlockSpec((f_in, f_total), lambda i: (0, 0)),   # W_all resident
            ],
            out_specs=pl.BlockSpec((tm, f_total), lambda i: (i, 0)),
        ),
        compiler_params=pltpu.CompilerParams(
            dimension_semantics=("parallel",),
            vmem_limit_bytes=vmem_limit,
        ),
    )(x_pad, w_all)


# ---------------------------------------------------------------------------
# Kernel 2: aggregation + bias + per-branch row L2 normalization
# ---------------------------------------------------------------------------
def _agg_norm_kernel(xw_ref, a_ref, b_ref, out_ref):
    """One row tile of  L2norm_rows( A_hat @ XW + b ), split into two halves.

    xw_ref : (N_pad, F_total)  bf16  resident (constant index map)
    a_ref  : (TM, N_pad)       bf16  row slab of the normalized adjacency
    b_ref  : (1, F_total)      f32   resident fused bias
    out_ref: (TM, F_total)     f32
    """
    f_half = out_ref.shape[1] // 2

    # Dominant matmul: bf16 x bf16, f32 accumulation on the MXU.
    agg = jnp.dot(a_ref[...], xw_ref[...], preferred_element_type=jnp.float32)
    h = agg + b_ref[...]

    # Lane-masked per-branch L2 norm; padded zero columns contribute nothing,
    # and the output is written as one full-width (lane-dense) store.
    col = jax.lax.broadcasted_iota(jnp.int32, h.shape, dimension=1)
    left = col < f_half
    sq = h * h
    s1 = jnp.sum(jnp.where(left, sq, 0.0), axis=1, keepdims=True)
    s2 = jnp.sum(jnp.where(left, 0.0, sq), axis=1, keepdims=True)
    # F.normalize eps semantics: 1/max(sqrt(s), 1e-12) == rsqrt(max(s, 1e-24)).
    inv1 = jax.lax.rsqrt(jnp.maximum(s1, 1e-24))
    inv2 = jax.lax.rsqrt(jnp.maximum(s2, 1e-24))
    out_ref[...] = h * jnp.where(left, inv1, inv2)


def _aggregate_normalize(xw, a_hat, b_all, tm, vmem_limit):
    n_pad, f_total = xw.shape
    return pl.pallas_call(
        _agg_norm_kernel,
        out_shape=jax.ShapeDtypeStruct((n_pad, f_total), jnp.float32),
        grid_spec=pltpu.PrefetchScalarGridSpec(
            num_scalar_prefetch=0,
            grid=(n_pad // tm,),
            in_specs=[
                pl.BlockSpec((n_pad, f_total), lambda i: (0, 0)),  # XW resident (bf16)
                pl.BlockSpec((tm, n_pad), lambda i: (i, 0)),       # A_hat row slab (bf16)
                pl.BlockSpec((1, f_total), lambda i: (0, 0)),      # bias resident (f32)
            ],
            out_specs=pl.BlockSpec((tm, f_total), lambda i: (i, 0)),
        ),
        compiler_params=pltpu.CompilerParams(
            dimension_semantics=("parallel",),     # megacore shards row tiles on v7x
            vmem_limit_bytes=vmem_limit,
        ),
    )(xw, a_hat, b_all)


# ---------------------------------------------------------------------------
# Wrapper-side adjacency construction (dense, padded, bf16)
# ---------------------------------------------------------------------------
def build_normalized_adjacency(edge_index, num_nodes, n_pad, out_dtype=jnp.bfloat16):
    """GCN-normalized adjacency D^{-1/2} (A + I_remaining) D^{-1/2}, built directly
    at padded size (n_pad, n_pad); scale + cast fused into a single pass.

    Duplicate edges are counted (multigraph semantics, matching PyG gcn_norm with
    unit edge weights); self-loops are added only for nodes lacking one."""
    src = edge_index[0]
    dst = edge_index[1]
    adj = jnp.zeros((n_pad, n_pad), jnp.float32)
    adj = adj.at[dst, src].add(1.0)                    # row = target, col = source
    diag = jnp.arange(num_nodes)
    has_self = adj[diag, diag] > 0
    adj = adj.at[diag, diag].add(jnp.where(has_self, 0.0, 1.0))   # remaining self-loops
    deg = jnp.sum(adj, axis=1)
    d_inv_sqrt = jnp.where(deg > 0, jax.lax.rsqrt(deg), 0.0)
    return (adj * d_inv_sqrt[:, None] * d_inv_sqrt[None, :]).astype(out_dtype)


# ---------------------------------------------------------------------------
# Model wrapper with deterministic synthetic parameters
# ---------------------------------------------------------------------------
class MyModel1Pallas:
    """Matches my_model1(dims, act='ident'): two GCNConv(f_in,20) -> Linear(20,f_out)
    branches with identity activation and per-row L2 normalization."""

    HIDDEN = 20

    def __init__(self, dims, key):
        f_in, f_out = dims
        self.f_out = f_out
        h = self.HIDDEN
        ks = jax.random.split(key, 6)

        def glorot(k, shape):
            limit = jnp.sqrt(6.0 / (shape[0] + shape[1]))
            return jax.random.uniform(k, shape, jnp.float32, -limit, limit)

        # GCNConv weights (glorot) + zero biases.
        w_gcn1 = glorot(ks[0], (f_in, h))
        b_gcn1 = jnp.zeros((1, h), jnp.float32)
        w_gcn2 = glorot(ks[1], (f_in, h))
        b_gcn2 = jnp.zeros((1, h), jnp.float32)
        # Linear(20, f_out), stored transposed as (20, f_out).
        bound = 1.0 / jnp.sqrt(float(h))
        w_lin1 = jax.random.uniform(ks[2], (h, f_out), jnp.float32, -bound, bound)
        b_lin1 = jax.random.uniform(ks[3], (1, f_out), jnp.float32, -bound, bound)
        w_lin2 = jax.random.uniform(ks[4], (h, f_out), jnp.float32, -bound, bound)
        b_lin2 = jax.random.uniform(ks[5], (1, f_out), jnp.float32, -bound, bound)

        # Fold Linear into the GCN weight (exact: activation is identity).
        w_f1 = jnp.dot(w_gcn1, w_lin1)                      # (f_in, f_out)
        w_f2 = jnp.dot(w_gcn2, w_lin2)
        b_f1 = jnp.dot(b_gcn1, w_lin1) + b_lin1             # (1, f_out)
        b_f2 = jnp.dot(b_gcn2, w_lin2) + b_lin2

        # Pad each branch half to a multiple of 64 so the concatenated output
        # width is a multiple of 128 (lane-dense, unmasked stores).
        self.f_pad = _round_up(f_out, 64)
        pad_c = self.f_pad - f_out
        w_f1 = jnp.pad(w_f1, ((0, 0), (0, pad_c)))
        w_f2 = jnp.pad(w_f2, ((0, 0), (0, pad_c)))
        b_f1 = jnp.pad(b_f1, ((0, 0), (0, pad_c)))
        b_f2 = jnp.pad(b_f2, ((0, 0), (0, pad_c)))
        self.w_all = jnp.concatenate([w_f1, w_f2], axis=1)   # (f_in, 2*f_pad)
        self.b_all = jnp.concatenate([b_f1, b_f2], axis=1)   # (1,    2*f_pad)
        # TODO(synk): self.bn (BatchNorm1d) is declared but unused in forward -> not implemented.

    def __call__(self, x, edge_index):
        n = x.shape[0]
        plan = _vmem_plan()
        n_pad = _round_up(n, 256)                               # 128-lane-aligned A_hat
        tm = _pick_row_tile(n_pad, plan["slab_bytes"], plan["tm_cap"])
        n_pad = _round_up(n_pad, tm)                            # grid-divisible

        a_hat = build_normalized_adjacency(edge_index, n, n_pad)
        x_pad = jnp.pad(x.astype(jnp.float32), ((0, n_pad - n), (0, 0)))

        xw = _project(x_pad, self.w_all, tm, plan["vmem_limit"])             # (n_pad, 2*f_pad) bf16
        out = _aggregate_normalize(xw, a_hat, self.b_all, tm, plan["vmem_limit"])

        out1 = out[:n, : self.f_out]
        out2 = out[:n, self.f_pad : self.f_pad + self.f_out]
        return out1, out2


if __name__ == "__main__":
    key = jax.random.PRNGKey(0)
    k_x, k_params = jax.random.split(key)

    num_nodes = 8
    dims = (16, 32)  # dims[0] = input feature dim, dims[1] = output dim

    x = jax.random.normal(k_x, (num_nodes, dims[0]), jnp.float32)
    # Simple bidirectional ring graph; edge_index shape (2, E).
    src = jnp.arange(num_nodes, dtype=jnp.int32)
    dst = (src + 1) % num_nodes
    edge_index = jnp.stack(
        [jnp.concatenate([src, dst]), jnp.concatenate([dst, src])], axis=0
    )

    model = MyModel1Pallas(dims, k_params)
    out1, out2 = model(x, edge_index)
    jax.block_until_ready((out1, out2))

    assert out1.shape == (num_nodes, dims[1])
    assert out2.shape == (num_nodes, dims[1])
    assert bool(jnp.all(jnp.isfinite(out1))) and bool(jnp.all(jnp.isfinite(out2)))
    # Rows should be (approximately) unit L2 norm.
    n1 = jnp.linalg.norm(out1, axis=1)
    n2 = jnp.linalg.norm(out2, axis=1)
    assert bool(jnp.all(jnp.abs(n1 - 1.0) < 1e-2)) and bool(jnp.all(jnp.abs(n2 - 1.0) < 1e-2))
    print("KERNEL_OK")
</pallas_src>

<mosaic_0001>
module attributes {stable_mosaic.version = 11 : i64} {
  func.func @_project_kernel(%arg0: i32, %arg1: memref<256x16xf32, #tpu.memory_space<vmem>>, %arg2: memref<16x128xf32, #tpu.memory_space<vmem>>, %arg3: memref<256x128xbf16, #tpu.memory_space<vmem>>) attributes {dimension_semantics = [#tpu.dimension_semantics<parallel>], iteration_bounds = array<i64: 1>, scalar_prefetch = 0 : i64, scratch_operands = 0 : i64, tpu.core_type = #tpu.core_type<tc>, window_params = [{transform_indices = @transform_0, window_bounds = array<i64: 256, 16>}, {pipeline_mode = #tpu.pipeline_mode<synchronous>, transform_indices = @transform_1, window_bounds = array<i64: 16, 128>}, {transform_indices = @transform_2, window_bounds = array<i64: 256, 128>}]} {
    %c0 = arith.constant 0 : index
    %c0_0 = arith.constant 0 : index
    %0 = vector.load %arg1[%c0, %c0_0] : memref<256x16xf32, #tpu.memory_space<vmem>>, vector<256x16xf32>
    %c0_1 = arith.constant 0 : index
    %c0_2 = arith.constant 0 : index
    %1 = vector.load %arg2[%c0_1, %c0_2] : memref<16x128xf32, #tpu.memory_space<vmem>>, vector<16x128xf32>
    %cst = arith.constant dense<0.000000e+00> : vector<256x128xf32>
    %2 = tpu.matmul %0, %1, %cst {dimension_numbers = #tpu.dot_dimension_numbers<[1], [0], [0], [1], [0, 0, 1, 1], [], []>} : vector<256x16xf32>, vector<16x128xf32>, vector<256x128xf32> -> vector<256x128xf32>
    %3 = arith.truncf %2 : vector<256x128xf32> to vector<256x128xbf16>
    %c0_3 = arith.constant 0 : index
    %c0_4 = arith.constant 0 : index
    %4 = vector.load %arg3[%c0_3, %c0_4] : memref<256x128xbf16, #tpu.memory_space<vmem>>, vector<256x128xbf16>
    tpu.vector_store %arg3[%c0_3, %c0_4], %3 {strides = array<i32>} : memref<256x128xbf16, #tpu.memory_space<vmem>>, vector<256x128xbf16>,
    return
  }
  func.func @transform_0(%arg0: i32) -> (i32, i32) {
    %c0_i32 = arith.constant 0 : i32
    %c0_i32_0 = arith.constant 0 : i32
    return %arg0, %c0_i32 : i32, i32
  }
  func.func @transform_1(%arg0: i32) -> (i32, i32) {
    %c0_i32 = arith.constant 0 : i32
    %c0_i32_0 = arith.constant 0 : i32
    %c0_i32_1 = arith.constant 0 : i32
    return %c0_i32, %c0_i32_0 : i32, i32
  }
  func.func @transform_2(%arg0: i32) -> (i32, i32) {
    %c0_i32 = arith.constant 0 : i32
    %c0_i32_0 = arith.constant 0 : i32
    return %arg0, %c0_i32 : i32, i32
  }
}

</mosaic_0001>

<llo_original>
// kernel: tpu_custom_call.1
$region0: #{tpu_custom_call.1}
  #allocation0 [shape = 'u32[]', space=smem, size = 0x4, offset = 0x4, fixed_abs, tag = 'smem constant byte address 0x4 - core index']
  #allocation1 [shape = 'u32[144,128]{1,0:T(1,128)}', space=vmem, size = 0x12000, scoped, tag = 'internal scratch']
  %s0 = inlined_call_operand.vmem [shape: f32[256,16], index: 0, kind: input, shape index: {}]
  %s1 = inlined_call_operand.vmem [shape: f32[16,128], index: 1, kind: input, shape index: {}]
  %s2 = inlined_call_operand.hbm [shape: bf16[256,128], index: 2, kind: output, shape index: {}]
  %s3 = sld [smem:[#allocation0]]
  $region18: #{tpu_custom_call.1} parent=0
    _
  %s5 = ssub.s32 1, %s3
  %s6 = scalar_select 0, %s5, %s3
  $region1: #{tpu_custom_call.1} parent=0
    #allocation2 [shape = 'u8[65536]{0}', space=vmem, size = 0x10000, scoped, tag = 'output window, operand 0, single buffered']
    #allocation3 [shape = 's32[1]{0}', space=sflag, size = 0x4, scoped, tag = 'scoped memory for tpu_custom_call.1']
    %7 = vsyncpa [#allocation3], 0
    // Predicated region
    $region2: #{tpu_custom_call.1} parent=1 // pred_check
      _
    $region3: #{tpu_custom_call.1} parent=1 // pred_check_branch
      %9 = sbr.rel (0) target = $region5
    $region4: #{tpu_custom_call.1} parent=1 // pred_region
      _
    $region5: #{tpu_custom_call.1} parent=1 // pred_fallthru
      _
    // Predicated region
    $region6: #{tpu_custom_call.1} parent=1 // pred_check
      _
    $region7: #{tpu_custom_call.1} parent=1 // pred_check_branch
      %11 = sbr.rel (0) target = $region9
    $region8: #{tpu_custom_call.1} parent=1 // pred_region
      _
    $region9: #{tpu_custom_call.1} parent=1 // pred_fallthru
      _
    %v12 = vld [vmem:[%s0] sm:$0xff]
    %v13 = vld [vmem:[%s0 + $0x8] sm:$0xff]
    %v14 = vld [vmem:[%s0 + $0x10] sm:$0xff]
    %v15 = vld [vmem:[%s0 + $0x18] sm:$0xff]
    %v16 = vld [vmem:[%s0 + $0x20] sm:$0xff]
    %v17 = vld [vmem:[%s0 + $0x28] sm:$0xff]
    %v18 = vld [vmem:[%s0 + $0x30] sm:$0xff]
    %v19 = vld [vmem:[%s0 + $0x38] sm:$0xff]
    %v20 = vld [vmem:[%s0 + $0x40] sm:$0xff]
    %v21 = vld [vmem:[%s0 + $0x48] sm:$0xff]
    %v22 = vld [vmem:[%s0 + $0x50] sm:$0xff]
    %v23 = vld [vmem:[%s0 + $0x58] sm:$0xff]
    %v24 = vld [vmem:[%s0 + $0x60] sm:$0xff]
    %v25 = vld [vmem:[%s0 + $0x68] sm:$0xff]
    %v26 = vld [vmem:[%s0 + $0x70] sm:$0xff]
    %v27 = vld [vmem:[%s0 + $0x78] sm:$0xff]
    %v28 = vld [vmem:[%s0 + $0x80] sm:$0xff]
    %v29 = vld [vmem:[%s0 + $0x88] sm:$0xff]
    %v30 = vld [vmem:[%s0 + $0x90] sm:$0xff]
    %v31 = vld [vmem:[%s0 + $0x98] sm:$0xff]
    %v32 = vld [vmem:[%s0 + $0xa0] sm:$0xff]
    %v33 = vld [vmem:[%s0 + $0xa8] sm:$0xff]
    %v34 = vld [vmem:[%s0 + $0xb0] sm:$0xff]
    %v35 = vld [vmem:[%s0 + $0xb8] sm:$0xff]
    %v36 = vld [vmem:[%s0 + $0xc0] sm:$0xff]
    %v37 = vld [vmem:[%s0 + $0xc8] sm:$0xff]
    %v38 = vld [vmem:[%s0 + $0xd0] sm:$0xff]
    %v39 = vld [vmem:[%s0 + $0xd8] sm:$0xff]
    %v40 = vld [vmem:[%s0 + $0xe0] sm:$0xff]
    %v41 = vld [vmem:[%s0 + $0xe8] sm:$0xff]
    %v42 = vld [vmem:[%s0 + $0xf0] sm:$0xff]
    %v43 = vld [vmem:[%s0 + $0xf8] sm:$0xff]
    %v44 = vld [vmem:[%s1] sm:$0xff]
    %v45 = vld [vmem:[%s1 + $0x8] sm:$0xff]
    %vm46 = vcmask 130048
    %v48 = vsel %vm46, %v12, 0
    %v51 = vsel %vm46, %v13, 0
    %v54 = vsel %vm46, %v14, 0
    %v57 = vsel %vm46, %v15, 0
    %v60 = vsel %vm46, %v16, 0
    %v63 = vsel %vm46, %v17, 0
    %v66 = vsel %vm46, %v18, 0
    %v69 = vsel %vm46, %v19, 0
    %v72 = vsel %vm46, %v20, 0
    %v75 = vsel %vm46, %v21, 0
    %v78 = vsel %vm46, %v22, 0
    %v81 = vsel %vm46, %v23, 0
    %v84 = vsel %vm46, %v24, 0
    %v87 = vsel %vm46, %v25, 0
    %v90 = vsel %vm46, %v26, 0
    %v93 = vsel %vm46, %v27, 0
    %v96 = vsel %vm46, %v28, 0
    %v99 = vsel %vm46, %v29, 0
    %v102 = vsel %vm46, %v30, 0
    %v105 = vsel %vm46, %v31, 0
    %v108 = vsel %vm46, %v32, 0
    %v111 = vsel %vm46, %v33, 0
    %v114 = vsel %vm46, %v34, 0
    %v117 = vsel %vm46, %v35, 0
    %v120 = vsel %vm46, %v36, 0
    %v123 = vsel %vm46, %v37, 0
    %v126 = vsel %vm46, %v38, 0
    %v129 = vsel %vm46, %v39, 0
    %v132 = vsel %vm46, %v40, 0
    %v135 = vsel %vm46, %v41, 0
    %v138 = vsel %vm46, %v42, 0
    %v141 = vsel %vm46, %v43, 0
    %143 = vmatprep.subr.mxu0 0.0
    %144 = vmatpush1.msra.mxu0 %v44
    %145 = vmatprep.subr.mxu0 0.0
    %146 = vmatpush1.msra.mxu0 %v45
    %147 = vmatprep.subr.mxu0 0.0
    %148 = vmatpush1.msra.mxu0 0.0
    %149 = vmatprep.subr.mxu0 0.0
    %150 = vmatpush1.msra.mxu0 0.0
    %151 = vmatprep.subr.mxu0 0.0
    %152 = vmatpush1.msra.mxu0 0.0
    %153 = vmatprep.subr.mxu0 0.0
    %154 = vmatpush1.msra.mxu0 0.0
    %155 = vmatprep.subr.mxu0 0.0
    %156 = vmatpush1.msra.mxu0 0.0
    %157 = vmatprep.subr.mxu0 0.0
    %158 = vmatpush1.msra.mxu0 0.0
    %159 = vmatprep.subr.mxu0 0.0
    %160 = vmatpush1.msra.mxu0 0.0
    %161 = vmatprep.subr.mxu0 0.0
    %162 = vmatpush1.msra.mxu0 0.0
    %163 = vmatprep.subr.mxu0 0.0
    %164 = vmatpush1.msra.mxu0 0.0
    %165 = vmatprep.subr.mxu0 0.0
    %166 = vmatpush1.msra.mxu0 0.0
    %167 = vmatprep.subr.mxu0 0.0
    %168 = vmatpush1.msra.mxu0 0.0
    %169 = vmatprep.subr.mxu0 0.0
    %170 = vmatpush1.msra.mxu0 0.0
    %171 = vmatprep.subr.mxu0 0.0
    %172 = vmatpush1.msra.mxu0 0.0
    %173 = vmatprep.subr.mxu0 0.0
    %174 = vmatpush1.msra.mxu0 0.0
    %175 = vmatprep.subr.mxu0 0.0
    %176 = vmatpush1.msra.mxu0 0.0
    %177 = vmatprep.subr.mxu0 0.0
    %178 = vmatpush1.msra.mxu0 0.0
    %179 = vmatprep.subr.mxu0 0.0
    %180 = vmatpush1.msra.mxu0 0.0
    %181 = vmatprep.subr.mxu0 0.0
    %182 = vmatpush1.msra.mxu0 0.0
    %183 = vmatprep.subr.mxu0 0.0
    %184 = vmatpush1.msra.mxu0 0.0
    %185 = vmatprep.subr.mxu0 0.0
    %186 = vmatpush1.msra.mxu0 0.0
    %187 = vmatprep.subr.mxu0 0.0
    %188 = vmatpush1.msra.mxu0 0.0
    %189 = vmatprep.subr.mxu0 0.0
    %190 = vmatpush1.msra.mxu0 0.0
    %191 = vmatprep.subr.mxu0 0.0
    %192 = vmatpush1.msra.mxu0 0.0
    %193 = vmatprep.subr.mxu0 0.0
    %194 = vmatpush1.msra.mxu0 0.0
    %195 = vmatprep.subr.mxu0 0.0
    %196 = vmatpush1.msra.mxu0 0.0
    %197 = vmatprep.subr.mxu0 0.0
    %198 = vmatpush1.msra.mxu0 0.0
    %199 = vmatprep.subr.mxu0 0.0
    %200 = vmatpush1.msra.mxu0 0.0
    %201 = vmatprep.subr.mxu0 0.0
    %202 = vmatpush1.msra.mxu0 0.0
    %203 = vmatprep.subr.mxu0 0.0
    %204 = vmatpush1.msra.mxu0 0.0
    %205 = vmatprep.subr.mxu0 0.0
    %206 = vmatpush1.msra.mxu0 0.0
    %207 = vmatprep.mubr.f32.mxu0 0.0
    %208 = vmatmul.mubr.f32.gmra.mrb[0].mxu0 %v48
    %v209 = vpop.f32.mrb[0].mxu0
    %v210 = vadd.f32 0.0, %v209
    %v211 = vpop.f32.mrb[0].mxu0
    %212 = vmatprep.mubr.f32.mxu0 0.0
    %213 = vmatmul.mubr.f32.gmra.mrb[0].mxu0 %v51
    %v214 = vpop.f32.mrb[0].mxu0
    %v215 = vadd.f32 0.0, %v214
    %v216 = vpop.f32.mrb[0].mxu0
    %217 = vmatprep.mubr.f32.mxu0 0.0
    %218 = vmatmul.mubr.f32.gmra.mrb[0].mxu0 %v54
    %v219 = vpop.f32.mrb[0].mxu0
    %v220 = vadd.f32 0.0, %v219
    %v221 = vpop.f32.mrb[0].mxu0
    %222 = vmatprep.mubr.f32.mxu0 0.0
    %223 = vmatmul.mubr.f32.gmra.mrb[0].mxu0 %v57
    %v224 = vpop.f32.mrb[0].mxu0
    %v225 = vadd.f32 0.0, %v224
    %v226 = vpop.f32.mrb[0].mxu0
    %227 = vmatprep.mubr.f32.mxu0 0.0
    %228 = vmatmul.mubr.f32.gmra.mrb[0].mxu0 %v60
    %v229 = vpop.f32.mrb[0].mxu0
    %v230 = vadd.f32 0.0, %v229
    %v231 = vpop.f32.mrb[0].mxu0
    %232 = vmatprep.mubr.f32.mxu0 0.0
    %233 = vmatmul.mubr.f32.gmra.mrb[0].mxu0 %v63
    %v234 = vpop.f32.mrb[0].mxu0
    %v235 = vadd.f32 0.0, %v234
    %v236 = vpop.f32.mrb[0].mxu0
    %237 = vmatprep.mubr.f32.mxu0 0.0
    %238 = vmatmul.mubr.f32.gmra.mrb[0].mxu0 %v66
    %v239 = vpop.f32.mrb[0].mxu0
    %v240 = vadd.f32 0.0, %v239
    %v241 = vpop.f32.mrb[0].mxu0
    %242 = vmatprep.mubr.f32.mxu0 0.0
    %243 = vmatmul.mubr.f32.gmra.mrb[0].mxu0 %v69
    %v244 = vpop.f32.mrb[0].mxu0
    %v245 = vadd.f32 0.0, %v244
    %v246 = vpop.f32.mrb[0].mxu0
    %247 = vmatprep.mubr.f32.mxu0 0.0
    %248 = vmatmul.mubr.f32.gmra.mrb[0].mxu0 %v72
    %v249 = vpop.f32.mrb[0].mxu0
    %v250 = vadd.f32 0.0, %v249
    %v251 = vpop.f32.mrb[0].mxu0
    %252 = vmatprep.mubr.f32.mxu0 0.0
    %253 = vmatmul.mubr.f32.gmra.mrb[0].mxu0 %v75
    %v254 = vpop.f32.mrb[0].mxu0
    %v255 = vadd.f32 0.0, %v254
    %v256 = vpop.f32.mrb[0].mxu0
    %257 = vmatprep.mubr.f32.mxu0 0.0
    %258 = vmatmul.mubr.f32.gmra.mrb[0].mxu0 %v78
    %v259 = vpop.f32.mrb[0].mxu0
    %v260 = vadd.f32 0.0, %v259
    %v261 = vpop.f32.mrb[0].mxu0
    %262 = vmatprep.mubr.f32.mxu0 0.0
    %263 = vmatmul.mubr.f32.gmra.mrb[0].mxu0 %v81
    %v264 = vpop.f32.mrb[0].mxu0
    %v265 = vadd.f32 0.0, %v264
    %v266 = vpop.f32.mrb[0].mxu0
    %267 = vmatprep.mubr.f32.mxu0 0.0
    %268 = vmatmul.mubr.f32.gmra.mrb[0].mxu0 %v84
    %v269 = vpop.f32.mrb[0].mxu0
    %v270 = vadd.f32 0.0, %v269
    %v271 = vpop.f32.mrb[0].mxu0
    %272 = vmatprep.mubr.f32.mxu0 0.0
    %273 = vmatmul.mubr.f32.gmra.mrb[0].mxu0 %v87
    %v274 = vpop.f32.mrb[0].mxu0
    %v275 = vadd.f32 0.0, %v274
    %v276 = vpop.f32.mrb[0].mxu0
    %277 = vmatprep.mubr.f32.mxu0 0.0
    %278 = vmatmul.mubr.f32.gmra.mrb[0].mxu0 %v90
    %v279 = vpop.f32.mrb[0].mxu0
    %v280 = vadd.f32 0.0, %v279
    %v281 = vpop.f32.mrb[0].mxu0
    %282 = vmatprep.mubr.f32.mxu0 0.0
    %283 = vmatmul.mubr.f32.gmra.mrb[0].mxu0 %v93
    %v284 = vpop.f32.mrb[0].mxu0
    %v285 = vadd.f32 0.0, %v284
    %v286 = vpop.f32.mrb[0].mxu0
    %287 = vmatprep.mubr.f32.mxu0 0.0
    %288 = vmatmul.mubr.f32.gmra.mrb[0].mxu0 %v96
    %v289 = vpop.f32.mrb[0].mxu0
    %v290 = vadd.f32 0.0, %v289
    %v291 = vpop.f32.mrb[0].mxu0
    %292 = vmatprep.mubr.f32.mxu0 0.0
    %293 = vmatmul.mubr.f32.gmra.mrb[0].mxu0 %v99
    %v294 = vpop.f32.mrb[0].mxu0
    %v295 = vadd.f32 0.0, %v294
    %v296 = vpop.f32.mrb[0].mxu0
    %297 = vmatprep.mubr.f32.mxu0 0.0
    %298 = vmatmul.mubr.f32.gmra.mrb[0].mxu0 %v102
    %v299 = vpop.f32.mrb[0].mxu0
    %v300 = vadd.f32 0.0, %v299
    %v301 = vpop.f32.mrb[0].mxu0
    %302 = vmatprep.mubr.f32.mxu0 0.0
    %303 = vmatmul.mubr.f32.gmra.mrb[0].mxu0 %v105
    %v304 = vpop.f32.mrb[0].mxu0
    %v305 = vadd.f32 0.0, %v304
    %v306 = vpop.f32.mrb[0].mxu0
    %307 = vmatprep.mubr.f32.mxu0 0.0
    %308 = vmatmul.mubr.f32.gmra.mrb[0].mxu0 %v108
    %v309 = vpop.f32.mrb[0].mxu0
    %v310 = vadd.f32 0.0, %v309
    %v311 = vpop.f32.mrb[0].mxu0
    %312 = vmatprep.mubr.f32.mxu0 0.0
    %313 = vmatmul.mubr.f32.gmra.mrb[0].mxu0 %v111
    %v314 = vpop.f32.mrb[0].mxu0
    %v315 = vadd.f32 0.0, %v314
    %v316 = vpop.f32.mrb[0].mxu0
    %317 = vmatprep.mubr.f32.mxu0 0.0
    %318 = vmatmul.mubr.f32.gmra.mrb[0].mxu0 %v114
    %v319 = vpop.f32.mrb[0].mxu0
    %v320 = vadd.f32 0.0, %v319
    %v321 = vpop.f32.mrb[0].mxu0
    %322 = vmatprep.mubr.f32.mxu0 0.0
    %323 = vmatmul.mubr.f32.gmra.mrb[0].mxu0 %v117
    %v324 = vpop.f32.mrb[0].mxu0
    %v325 = vadd.f32 0.0, %v324
    %v326 = vpop.f32.mrb[0].mxu0
    %327 = vmatprep.mubr.f32.mxu0 0.0
    %328 = vmatmul.mubr.f32.gmra.mrb[0].mxu0 %v120
    %v329 = vpop.f32.mrb[0].mxu0
    %v330 = vadd.f32 0.0, %v329
    %v331 = vpop.f32.mrb[0].mxu0
    %332 = vmatprep.mubr.f32.mxu0 0.0
    %333 = vmatmul.mubr.f32.gmra.mrb[0].mxu0 %v123
    %v334 = vpop.f32.mrb[0].mxu0
    %v335 = vadd.f32 0.0, %v334
    %v336 = vpop.f32.mrb[0].mxu0
    %337 = vmatprep.mubr.f32.mxu0 0.0
    %338 = vmatmul.mubr.f32.gmra.mrb[0].mxu0 %v126
    %v339 = vpop.f32.mrb[0].mxu0
    %v340 = vadd.f32 0.0, %v339
    %v341 = vpop.f32.mrb[0].mxu0
    %342 = vmatprep.mubr.f32.mxu0 0.0
    %343 = vmatmul.mubr.f32.gmra.mrb[0].mxu0 %v129
    %v344 = vpop.f32.mrb[0].mxu0
    %v345 = vadd.f32 0.0, %v344
    %v346 = vpop.f32.mrb[0].mxu0
    %347 = vmatprep.mubr.f32.mxu0 0.0
    %348 = vmatmul.mubr.f32.gmra.mrb[0].mxu0 %v132
    %v349 = vpop.f32.mrb[0].mxu0
    %v350 = vadd.f32 0.0, %v349
    %v351 = vpop.f32.mrb[0].mxu0
    %352 = vmatprep.mubr.f32.mxu0 0.0
    %353 = vmatmul.mubr.f32.gmra.mrb[0].mxu0 %v135
    %v354 = vpop.f32.mrb[0].mxu0
    %v355 = vadd.f32 0.0, %v354
    %v356 = vpop.f32.mrb[0].mxu0
    %357 = vmatprep.mubr.f32.mxu0 0.0
    %358 = vmatmul.mubr.f32.gmra.mrb[0].mxu0 %v138
    %v359 = vpop.f32.mrb[0].mxu0
    %v360 = vadd.f32 0.0, %v359
    %v361 = vpop.f32.mrb[0].mxu0
    %362 = vmatprep.mubr.f32.mxu0 0.0
    %363 = vmatmul.mubr.f32.gmra.mrb[0].mxu0 %v141
    %v364 = vpop.f32.mrb[0].mxu0
    %v365 = vadd.f32 0.0, %v364
    %v366 = vpop.f32.mrb[0].mxu0
    %367 = vdwg.mxu0
    %v368 = vpack.c.bf16 %v215, %v210
    %v369 = vpack.c.bf16 %v225, %v220
    %v370 = vpack.c.bf16 %v235, %v230
    %v371 = vpack.c.bf16 %v245, %v240
    %v372 = vpack.c.bf16 %v255, %v250
    %v373 = vpack.c.bf16 %v265, %v260
    %v374 = vpack.c.bf16 %v275, %v270
    %v375 = vpack.c.bf16 %v285, %v280
    %v376 = vpack.c.bf16 %v295, %v290
    %v377 = vpack.c.bf16 %v305, %v300
    %v378 = vpack.c.bf16 %v315, %v310
    %v379 = vpack.c.bf16 %v325, %v320
    %v380 = vpack.c.bf16 %v335, %v330
    %v381 = vpack.c.bf16 %v345, %v340
    %v382 = vpack.c.bf16 %v355, %v350
    %v383 = vpack.c.bf16 %v365, %v360
    %v400 = vunpack.c.l.b16 %v368
    %v401 = vunpack.c.h.b16 %v368
    %v402 = vunpack.c.l.b16 %v369
    %v403 = vunpack.c.h.b16 %v369
    %v404 = vunpack.c.l.b16 %v370
    %v405 = vunpack.c.h.b16 %v370
    %v406 = vunpack.c.l.b16 %v371
    %v407 = vunpack.c.h.b16 %v371
    %v408 = vunpack.c.l.b16 %v372
    %v409 = vunpack.c.h.b16 %v372
    %v410 = vunpack.c.l.b16 %v373
    %v411 = vunpack.c.h.b16 %v373
    %v412 = vunpack.c.l.b16 %v374
    %v413 = vunpack.c.h.b16 %v374
    %v414 = vunpack.c.l.b16 %v375
    %v415 = vunpack.c.h.b16 %v375
    %v416 = vunpack.c.l.b16 %v376
    %v417 = vunpack.c.h.b16 %v376
    %v418 = vunpack.c.l.b16 %v377
    %v419 = vunpack.c.h.b16 %v377
    %v420 = vunpack.c.l.b16 %v378
    %v421 = vunpack.c.h.b16 %v378
    %v422 = vunpack.c.l.b16 %v379
    %v423 = vunpack.c.h.b16 %v379
    %v424 = vunpack.c.l.b16 %v380
    %v425 = vunpack.c.h.b16 %v380
    %v426 = vunpack.c.l.b16 %v381
    %v427 = vunpack.c.h.b16 %v381
    %v428 = vunpack.c.l.b16 %v382
    %v429 = vunpack.c.h.b16 %v382
    %v430 = vunpack.c.l.b16 %v383
    %v431 = vunpack.c.h.b16 %v383
    %v432 = vpack.c.b16 %v400, %v400
    %v433 = vpack.c.b16 %v401, %v401
    %v434 = vpack.c.b16 %v402, %v402
    %v435 = vpack.c.b16 %v403, %v403
    %v436 = vpack.c.b16 %v404, %v404
    %v437 = vpack.c.b16 %v405, %v405
    %v438 = vpack.c.b16 %v406, %v406
    %v439 = vpack.c.b16 %v407, %v407
    %v440 = vpack.c.b16 %v408, %v408
    %v441 = vpack.c.b16 %v409, %v409
    %v442 = vpack.c.b16 %v410, %v410
    %v443 = vpack.c.b16 %v411, %v411
    %v444 = vpack.c.b16 %v412, %v412
    %v445 = vpack.c.b16 %v413, %v413
    %v446 = vpack.c.b16 %v414, %v414
    %v447 = vpack.c.b16 %v415, %v415
    %v448 = vpack.c.b16 %v416, %v416
    %v449 = vpack.c.b16 %v417, %v417
    %v450 = vpack.c.b16 %v418, %v418
    %v451 = vpack.c.b16 %v419, %v419
    %v452 = vpack.c.b16 %v420, %v420
    %v453 = vpack.c.b16 %v421, %v421
    %v454 = vpack.c.b16 %v422, %v422
    %v455 = vpack.c.b16 %v423, %v423
    %v456 = vpack.c.b16 %v424, %v424
    %v457 = vpack.c.b16 %v425, %v425
    %v458 = vpack.c.b16 %v426, %v426
    %v459 = vpack.c.b16 %v427, %v427
    %v460 = vpack.c.b16 %v428, %v428
    %v461 = vpack.c.b16 %v429, %v429
    %v462 = vpack.c.b16 %v430, %v430
    %v463 = vpack.c.b16 %v431, %v431
    %496 = vst [vmem:[#allocation2] sm:$0xf] %v432
    %497 = vst [vmem:[#allocation2 + $0x4] sm:$0xf] %v433
    %498 = vst [vmem:[#allocation2 + $0x8] sm:$0xf] %v434
    %499 = vst [vmem:[#allocation2 + $0xc] sm:$0xf] %v435
    %500 = vst [vmem:[#allocation2 + $0x10] sm:$0xf] %v436
    %501 = vst [vmem:[#allocation2 + $0x14] sm:$0xf] %v437
    %502 = vst [vmem:[#allocation2 + $0x18] sm:$0xf] %v438
    %503 = vst [vmem:[#allocation2 + $0x1c] sm:$0xf] %v439
    %504 = vst [vmem:[#allocation2 + $0x20] sm:$0xf] %v440
    %505 = vst [vmem:[#allocation2 + $0x24] sm:$0xf] %v441
    %506 = vst [vmem:[#allocation2 + $0x28] sm:$0xf] %v442
    %507 = vst [vmem:[#allocation2 + $0x2c] sm:$0xf] %v443
    %508 = vst [vmem:[#allocation2 + $0x30] sm:$0xf] %v444
    %509 = vst [vmem:[#allocation2 + $0x34] sm:$0xf] %v445
    %510 = vst [vmem:[#allocation2 + $0x38] sm:$0xf] %v446
    %511 = vst [vmem:[#allocation2 + $0x3c] sm:$0xf] %v447
    %512 = vst [vmem:[#allocation2 + $0x40] sm:$0xf] %v448
    %513 = vst [vmem:[#allocation2 + $0x44] sm:$0xf] %v449
    %514 = vst [vmem:[#allocation2 + $0x48] sm:$0xf] %v450
    %515 = vst [vmem:[#allocation2 + $0x4c] sm:$0xf] %v451
    %516 = vst [vmem:[#allocation2 + $0x50] sm:$0xf] %v452
    %517 = vst [vmem:[#allocation2 + $0x54] sm:$0xf] %v453
    %518 = vst [vmem:[#allocation2 + $0x58] sm:$0xf] %v454
    %519 = vst [vmem:[#allocation2 + $0x5c] sm:$0xf] %v455
    %520 = vst [vmem:[#allocation2 + $0x60] sm:$0xf] %v456
    %521 = vst [vmem:[#allocation2 + $0x64] sm:$0xf] %v457
    %522 = vst [vmem:[#allocation2 + $0x68] sm:$0xf] %v458
    %523 = vst [vmem:[#allocation2 + $0x6c] sm:$0xf] %v459
    %524 = vst [vmem:[#allocation2 + $0x70] sm:$0xf] %v460
    %525 = vst [vmem:[#allocation2 + $0x74] sm:$0xf] %v461
    %526 = vst [vmem:[#allocation2 + $0x78] sm:$0xf] %v462
    %527 = vst [vmem:[#allocation2 + $0x7c] sm:$0xf] %v463
    // Predicated region
    $region10: #{tpu_custom_call.1} parent=1 // pred_check
      _
    $region11: #{tpu_custom_call.1} parent=1 // pred_check_branch
      %529 = sbr.rel (0) target = $region13
    $region12: #{tpu_custom_call.1} parent=1 // pred_region
      %s531 = ssub.s32 2048, 2048
      %532 = vsyncadd [#allocation3], %s531
      %s533 = sshll.u32 [#allocation2], 4
      %s534 = int_to_ptr.vmem [resolvable:$true] %s533
      %539 = dma.vmem_to_hbm [thread:$0]  %s534, 2048, %s2, [#allocation3], 64, 64, 4
    $region13: #{tpu_custom_call.1} parent=1 // pred_fallthru
      _
    // Predicated region
    $region14: #{tpu_custom_call.1} parent=1 // pred_check
      _
    $region15: #{tpu_custom_call.1} parent=1 // pred_check_branch
      %541 = sbr.rel (0) target = $region17
    $region16: #{tpu_custom_call.1} parent=1 // pred_region
      %542 = dma.done [#allocation3], 2048
    $region17: #{tpu_custom_call.1} parent=1 // pred_fallthru
      _
    %543 = vsyncpa [#allocation3], 1

</llo_original>
